<compile_context>
chip_gen: v6e
topology: v6e:2x2x1
jax: 0.10.0
libtpu: 0.0.40
codegen_flags: <defaults>
</compile_context>

<pallas_src>
import functools

import jax
import jax.numpy as jnp
from jax.experimental import pallas as pl
from jax.experimental.pallas import tpu as pltpu


def _round_up(x, m):
    return (x + m - 1) // m * m


def _make_kernel(K, TM, WIN_p, stride, dilation):
    """Returns a kernel for grid (B, n_time_tiles); all K taps handled in-kernel."""

    def kernel(x_ref, w_ref, b_ref, o_ref):
        ti = pl.program_id(1)
        # First padded-input row needed by this output tile (sublane aligned: TM % 8 == 0).
        row0 = pl.multiple_of(ti * (TM * stride), 8)

        # One aligned window read covers every tap of this output tile.
        win = x_ref[0, pl.ds(row0, WIN_p), :]            # (WIN_p, C_in_p)

        # Accumulate in registers (f32); bias folded into the init (broadcasts over rows).
        acc = b_ref[...].astype(jnp.float32)             # (1, C_out_p)
        for k in range(K):                               # statically unrolled — K is tiny
            off = k * dilation
            if stride == 1:
                xk = win[off:off + TM]                   # (TM, C_in_p)
            else:
                # General stride: static strided slice of the loaded window.
                xk = jax.lax.slice(
                    win,
                    (off, 0),
                    (off + (TM - 1) * stride + 1, win.shape[1]),
                    (stride, 1),
                )
            acc = acc + jnp.dot(xk, w_ref[k], preferred_element_type=jnp.float32)

        o_ref[0] = acc.astype(o_ref.dtype)

    return kernel


@functools.partial(jax.jit, static_argnames=("stride", "padding", "dilation", "block_t"))
def conv_forward(x, weight, bias=None, *, stride=1, padding=0, dilation=1, block_t=None):
    """x: (B, T, C_in); weight: (K, C_in, C_out); bias: (C_out,) or None.

    Returns (B, T_out, C_out) — identical to the PyTorch module's forward
    (transpose -> Conv1d -> transpose).
    """
    B, T, C_in = x.shape
    K, _, C_out = weight.shape

    if bias is None:
        bias = jnp.zeros((C_out,), dtype=x.dtype)

    # Output length, identical to PyTorch Conv1d.
    T_out = (T + 2 * padding - dilation * (K - 1) - 1) // stride + 1

    # Lane-dense channel padding (no-op when channels are already multiples of 128).
    C_in_p = _round_up(C_in, 128)
    C_out_p = _round_up(C_out, 128)

    # Output row tile (sublane aligned).
    tm_cap = 256 if block_t is None else block_t
    TM = max(8, min(_round_up(tm_cap, 8), _round_up(T_out, 8)))
    T_out_p = _round_up(T_out, TM)
    n_tiles = T_out_p // TM

    # Window of padded-input rows read per tile, rounded up to full sublanes.
    WIN_p = _round_up((TM - 1) * stride + (K - 1) * dilation + 1, 8)
    T_in_p = _round_up(max((n_tiles - 1) * TM * stride + WIN_p, T + 2 * padding), 8)

    # Glue (XLA): zero-pad time (conv padding + tile/window slack) and channels.
    x_p = jnp.pad(x, ((0, 0),
                      (padding, T_in_p - T - padding),
                      (0, C_in_p - C_in)))
    w_p = jnp.pad(weight.astype(x.dtype),
                  ((0, 0), (0, C_in_p - C_in), (0, C_out_p - C_out)))
    b_p = jnp.pad(bias.astype(x.dtype), (0, C_out_p - C_out)).reshape(1, C_out_p)

    # Raise the scoped-VMEM limit only when the resident blocks would exceed the default.
    itemsize = jnp.dtype(x.dtype).itemsize
    est_vmem = itemsize * (2 * T_in_p * C_in_p        # input block (double-buffered)
                           + K * C_in_p * C_out_p     # resident weight
                           + C_out_p                  # resident bias
                           + 2 * TM * C_out_p)        # output block (double-buffered)
    vmem_limit_bytes = None
    if est_vmem > 24 * 1024 * 1024:
        vmem_limit_bytes = min(int(est_vmem * 1.5) + (8 << 20), 112 * 1024 * 1024)

    out = pl.pallas_call(
        _make_kernel(K, TM, WIN_p, stride, dilation),
        out_shape=jax.ShapeDtypeStruct((B, T_out_p, C_out_p), x.dtype),
        grid_spec=pltpu.PrefetchScalarGridSpec(
            num_scalar_prefetch=0,
            grid=(B, n_tiles),
            in_specs=[
                # Full (padded) time axis per batch; index constant in ti => one fetch per b.
                pl.BlockSpec((1, T_in_p, C_in_p), lambda b, ti: (b, 0, 0)),
                # Weight & bias: constant block index => resident for the whole grid.
                pl.BlockSpec((K, C_in_p, C_out_p), lambda b, ti: (0, 0, 0)),
                pl.BlockSpec((1, C_out_p), lambda b, ti: (0, 0)),
            ],
            out_specs=pl.BlockSpec((1, TM, C_out_p), lambda b, ti: (b, ti, 0)),
        ),
        compiler_params=pltpu.CompilerParams(
            dimension_semantics=("parallel", "parallel"),
            vmem_limit_bytes=vmem_limit_bytes,
        ),
    )(x_p, w_p, b_p)

    return out[:, :T_out, :C_out]


def _reference(x, weight, bias, *, stride, padding, dilation):
    """Pure-JAX reference (same math as torch Conv1d wrapped in transposes)."""
    x_ncw = jnp.transpose(x, (0, 2, 1))                 # (B, C_in, T)
    w_oik = jnp.transpose(weight, (2, 1, 0))            # (C_out, C_in, K)
    y = jax.lax.conv_general_dilated(
        x_ncw, w_oik,
        window_strides=(stride,),
        padding=[(padding, padding)],
        rhs_dilation=(dilation,),
        dimension_numbers=("NCH", "OIH", "NCH"),
    )
    y = y + bias[None, :, None]
    return jnp.transpose(y, (0, 2, 1))


if __name__ == "__main__":
    key = jax.random.PRNGKey(0)

    def make_case(k, B, T, C_in, C_out, K):
        kx, kw, kb = jax.random.split(k, 3)
        fan_in, fan_out = C_in * K, C_out * K
        limit = (6.0 / (fan_in + fan_out)) ** 0.5
        w = jax.random.uniform(kw, (K, C_in, C_out), jnp.float32, -limit, limit)
        b = jax.random.uniform(kb, (C_out,), jnp.float32, -0.1, 0.1)
        x = jax.random.normal(kx, (B, T, C_in), jnp.float32)
        return x, w, b

    k1, k2, k3 = jax.random.split(key, 3)

    # Case 1: FastSpeech2-style "same" conv (kernel_size=3, padding=1, stride=1).
    x, w, b = make_case(k1, B=2, T=16, C_in=8, C_out=16, K=3)
    y = conv_forward(x, w, b, stride=1, padding=1, dilation=1)
    y = jax.block_until_ready(y)
    y_ref = _reference(x, w, b, stride=1, padding=1, dilation=1)
    assert y.shape == y_ref.shape, (y.shape, y_ref.shape)
    assert float(jnp.max(jnp.abs(y - y_ref))) < 1e-4

    # Case 2: dilated conv, multiple time tiles, T_out not a multiple of the tile size.
    x, w, b = make_case(k2, B=2, T=20, C_in=8, C_out=16, K=3)
    y = conv_forward(x, w, b, stride=1, padding=2, dilation=2, block_t=8)
    y = jax.block_until_ready(y)
    y_ref = _reference(x, w, b, stride=1, padding=2, dilation=2)
    assert y.shape == y_ref.shape, (y.shape, y_ref.shape)
    assert float(jnp.max(jnp.abs(y - y_ref))) < 1e-4

    # Case 3: wider kernel (postnet-style K=5, "same" padding), single time tile.
    x, w, b = make_case(k3, B=2, T=24, C_in=32, C_out=32, K=5)
    y = conv_forward(x, w, b, stride=1, padding=2, dilation=1)
    y = jax.block_until_ready(y)
    y_ref = _reference(x, w, b, stride=1, padding=2, dilation=1)
    assert y.shape == y_ref.shape, (y.shape, y_ref.shape)
    assert float(jnp.max(jnp.abs(y - y_ref))) < 1e-4

    print("KERNEL_OK")
</pallas_src>

<mosaic_0001>
module attributes {stable_mosaic.version = 11 : i64} {
  func.func @kernel(%arg0: i32, %arg1: i32, %arg2: memref<1x24x128xf32, #tpu.memory_space<vmem>>, %arg3: memref<3x128x128xf32, #tpu.memory_space<vmem>>, %arg4: memref<1x128xf32, #tpu.memory_space<vmem>>, %arg5: memref<1x16x128xf32, #tpu.memory_space<vmem>>) attributes {dimension_semantics = [#tpu.dimension_semantics<parallel>, #tpu.dimension_semantics<parallel>], iteration_bounds = array<i64: 2, 1>, scalar_prefetch = 0 : i64, scratch_operands = 0 : i64, tpu.core_type = #tpu.core_type<tc>, window_params = [{transform_indices = @transform_0, window_bounds = array<i64: 1, 24, 128>}, {pipeline_mode = #tpu.pipeline_mode<synchronous>, transform_indices = @transform_1, window_bounds = array<i64: 3, 128, 128>}, {pipeline_mode = #tpu.pipeline_mode<synchronous>, transform_indices = @transform_2, window_bounds = array<i64: 1, 128>}, {transform_indices = @transform_3, window_bounds = array<i64: 1, 16, 128>}]} {
    %c16_i32 = arith.constant 16 : i32
    %0 = arith.muli %arg1, %c16_i32 : i32
    %1 = tpu.assume_multiple %0, 8 : i32
    %c0 = arith.constant 0 : index
    %2 = arith.index_cast %1 : i32 to index
    %c0_0 = arith.constant 0 : index
    %3 = vector.load %arg2[%c0, %2, %c0_0] : memref<1x24x128xf32, #tpu.memory_space<vmem>>, vector<1x24x128xf32>
    %4 = vector.shape_cast %3 : vector<1x24x128xf32> to vector<24x128xf32>
    %c0_1 = arith.constant 0 : index
    %c0_2 = arith.constant 0 : index
    %5 = vector.load %arg4[%c0_1, %c0_2] : memref<1x128xf32, #tpu.memory_space<vmem>>, vector<1x128xf32>
    %6 = vector.extract_strided_slice %4 {offsets = [0, 0], sizes = [16, 128], strides = [1, 1]} : vector<24x128xf32> to vector<16x128xf32>
    %c0_3 = arith.constant 0 : index
    %c0_4 = arith.constant 0 : index
    %c0_5 = arith.constant 0 : index
    %7 = vector.load %arg3[%c0_3, %c0_4, %c0_5] : memref<3x128x128xf32, #tpu.memory_space<vmem>>, vector<1x128x128xf32>
    %8 = vector.shape_cast %7 : vector<1x128x128xf32> to vector<128x128xf32>
    %cst = arith.constant dense<0.000000e+00> : vector<16x128xf32>
    %9 = tpu.matmul %6, %8, %cst {dimension_numbers = #tpu.dot_dimension_numbers<[1], [0], [0], [1], [0, 0, 1, 1], [], []>} : vector<16x128xf32>, vector<128x128xf32>, vector<16x128xf32> -> vector<16x128xf32>
    %10 = vector.broadcast %5 : vector<1x128xf32> to vector<16x128xf32>
    %11 = arith.addf %10, %9 : vector<16x128xf32>
    %12 = vector.extract_strided_slice %4 {offsets = [1, 0], sizes = [16, 128], strides = [1, 1]} : vector<24x128xf32> to vector<16x128xf32>
    %c1 = arith.constant 1 : index
    %c0_6 = arith.constant 0 : index
    %c0_7 = arith.constant 0 : index
    %13 = vector.load %arg3[%c1, %c0_6, %c0_7] : memref<3x128x128xf32, #tpu.memory_space<vmem>>, vector<1x128x128xf32>
    %14 = vector.shape_cast %13 : vector<1x128x128xf32> to vector<128x128xf32>
    %cst_8 = arith.constant dense<0.000000e+00> : vector<16x128xf32>
    %15 = tpu.matmul %12, %14, %cst_8 {dimension_numbers = #tpu.dot_dimension_numbers<[1], [0], [0], [1], [0, 0, 1, 1], [], []>} : vector<16x128xf32>, vector<128x128xf32>, vector<16x128xf32> -> vector<16x128xf32>
    %16 = arith.addf %11, %15 : vector<16x128xf32>
    %17 = vector.extract_strided_slice %4 {offsets = [2, 0], sizes = [16, 128], strides = [1, 1]} : vector<24x128xf32> to vector<16x128xf32>
    %c2 = arith.constant 2 : index
    %c0_9 = arith.constant 0 : index
    %c0_10 = arith.constant 0 : index
    %18 = vector.load %arg3[%c2, %c0_9, %c0_10] : memref<3x128x128xf32, #tpu.memory_space<vmem>>, vector<1x128x128xf32>
    %19 = vector.shape_cast %18 : vector<1x128x128xf32> to vector<128x128xf32>
    %cst_11 = arith.constant dense<0.000000e+00> : vector<16x128xf32>
    %20 = tpu.matmul %17, %19, %cst_11 {dimension_numbers = #tpu.dot_dimension_numbers<[1], [0], [0], [1], [0, 0, 1, 1], [], []>} : vector<16x128xf32>, vector<128x128xf32>, vector<16x128xf32> -> vector<16x128xf32>
    %21 = arith.addf %16, %20 : vector<16x128xf32>
    %c0_12 = arith.constant 0 : index
    %c0_13 = arith.constant 0 : index
    %c0_14 = arith.constant 0 : index
    %22 = vector.load %arg5[%c0_12, %c0_13, %c0_14] : memref<1x16x128xf32, #tpu.memory_space<vmem>>, vector<1x16x128xf32>
    %23 = vector.shape_cast %22 : vector<1x16x128xf32> to vector<16x128xf32>
    %24 = vector.shape_cast %21 : vector<16x128xf32> to vector<1x16x128xf32>
    tpu.vector_store %arg5[%c0_12, %c0_13, %c0_14], %24 {strides = array<i32>} : memref<1x16x128xf32, #tpu.memory_space<vmem>>, vector<1x16x128xf32>,
    return
  }
  func.func @transform_0(%arg0: i32, %arg1: i32) -> (i32, i32, i32) {
    %c0_i32 = arith.constant 0 : i32
    %c0_i32_0 = arith.constant 0 : i32
    %c0_i32_1 = arith.constant 0 : i32
    return %arg0, %c0_i32, %c0_i32_0 : i32, i32, i32
  }
  func.func @transform_1(%arg0: i32, %arg1: i32) -> (i32, i32, i32) {
    %c0_i32 = arith.constant 0 : i32
    %c0_i32_0 = arith.constant 0 : i32
    %c0_i32_1 = arith.constant 0 : i32
    %c0_i32_2 = arith.constant 0 : i32
    return %c0_i32, %c0_i32_0, %c0_i32_1 : i32, i32, i32
  }
  func.func @transform_2(%arg0: i32, %arg1: i32) -> (i32, i32) {
    %c0_i32 = arith.constant 0 : i32
    %c0_i32_0 = arith.constant 0 : i32
    %c0_i32_1 = arith.constant 0 : i32
    return %c0_i32, %c0_i32_0 : i32, i32
  }
  func.func @transform_3(%arg0: i32, %arg1: i32) -> (i32, i32, i32) {
    %c0_i32 = arith.constant 0 : i32
    %c0_i32_0 = arith.constant 0 : i32
    return %arg0, %arg1, %c0_i32 : i32, i32, i32
  }
}

</mosaic_0001>

<llo_original>
// kernel: conv_forward.1
$region0: #{conv_forward.1}
  #allocation0 [shape = 'u32[]', space=smem, size = 0x4, offset = 0x4, fixed_abs, tag = 'smem constant byte address 0x4 - core index']
  #allocation1 [shape = 'u32[144,128]{1,0:T(1,128)}', space=vmem, size = 0x12000, scoped, tag = 'internal scratch']
  %s0 = inlined_call_operand.vmem [shape: f32[2,24,128], index: 0, kind: input, shape index: {}]
  %s1 = inlined_call_operand.vmem [shape: f32[3,128,128], index: 1, kind: input, shape index: {}]
  %s2 = inlined_call_operand.vmem [shape: f32[1,128], index: 2, kind: input, shape index: {}]
  %s3 = inlined_call_operand.hbm [shape: f32[2,16,128], index: 3, kind: output, shape index: {}]
  %s4 = sld [smem:[#allocation0]]
  $region45: #{conv_forward.1} parent=0
    _
  %s6 = ssub.s32 1, %s4
  %s7 = scalar_select 0, %s6, %s4
  $region1: #{conv_forward.1} parent=0
    #allocation2 [shape = 'u8[16384]{0}', space=vmem, size = 0x4000, scoped, tag = 'output window, operand 0']
    #allocation3 [shape = 's32[2]{0}', space=sflag, size = 0x8, scoped, tag = 'scoped memory for conv_forward.1']
    %8 = vsyncpa [#allocation3], 0
    %s9 = scalar_lea.sflag [#allocation3], 1
    %10 = vsyncpa %s9, 0
    loop: start=0, step=1, limit=4
    $region2: #{conv_forward.1} parent=1 // loop_pre_header
      _
    $region3: #{conv_forward.1} parent=1 // loop_header
      %s12 = sphi 0, %s16
      %p13 = scmp.ge.s32.totalorder %s12, 4
      %s19 = sphi 0, %s31
      %s20 = sphi 0, %s27
      %s21 = sphi 0, %s19
      %s22 = sphi 0, %s20
      %s23 = sphi 0, %s21
      %s24 = sphi 0, %s22
      %s34 = sphi 0, %s36
      %s37 = sphi 0, %s34
      %s38 = sphi 0, %s37
      %s54 = sphi 0, %s38
      %s58 = sphi 0, %s58
      %s60 = sphi 0, %s58
      %s61 = sphi 0, %s60
      %s75 = sphi 0, %s61
      %s79 = sphi 0, %s79
      %s81 = sphi 0, %s79
      %s82 = sphi 0, %s81
      %s96 = sphi 0, %s82
      %s104 = sphi 0, %s106
      %s107 = sphi 0, %s104
      %s108 = sphi 0, %s107
      %s124 = sphi 0, %s108
    $region4: #{conv_forward.1} parent=1 // loop_header_branch
      %15 = sbr.rel (%p13) target = $region8
    $region5: #{conv_forward.1} parent=1 // loop_body
      %s17 = ssub.s32 %s12, 1
      %s18 = ssub.s32 %s12, 2
      %s25 = sadd.s32 1, %s20
      %p26 = scmp.ge.s32.totalorder %s25, 1
      %s27 = scalar_select %p26, 0, %s25
      %s28 = sadd.s32 1, %s19
      %s29 = scalar_select %p26, %s28, %s19
      %p30 = scmp.ge.s32.totalorder %s29, 2
      %s31 = scalar_select %p30, 0, %s29
      %s32 = ssub.s32 %s19, %s31
      %p33 = scmp.eq.s32.totalorder %s32, 0
      %s35 = sadd.s32 %s34, 1
      %s36 = scalar_select %p33, %s34, %s35
      %p39 = pneg %p33
      %p40 = scmp.eq.s32.totalorder %s12, 1
      %p41 = por %p39, %p40
      %p42 = scmp.ne.s32.totalorder %s34, %s37
      %p43 = scmp.eq.s32.totalorder %s12, 0
      %p44 = por %p42, %p43
      %p45 = scmp.ne.s32.totalorder %s34, %s37
      %p46 = scmp.eq.s32.totalorder %s17, 1
      %p47 = por %p45, %p46
      %p48 = scmp.ne.s32.totalorder %s37, %s38
      %p49 = scmp.eq.s32.totalorder %s17, 0
      %p50 = por %p48, %p49
      %p51 = scmp.ne.s32.totalorder %s37, %s38
      %p52 = scmp.eq.s32.totalorder %s18, 1
      %p53 = por %p51, %p52
      %p55 = scmp.ne.s32.totalorder %s38, %s54
      %p56 = scmp.eq.s32.totalorder %s18, 0
      %p57 = por %p55, %p56
      %s59 = sadd.s32 %s58, 1
      %p62 = scmp.eq.s32.totalorder %s12, 1
      %p63 = scmp.ne.s32.totalorder %s58, %s60
      %p64 = scmp.eq.s32.totalorder %s12, 0
      %p65 = por %p63, %p64
      %p66 = scmp.ne.s32.totalorder %s58, %s60
      %p67 = scmp.eq.s32.totalorder %s17, 1
      %p68 = por %p66, %p67
      %p69 = scmp.ne.s32.totalorder %s60, %s61
      %p70 = scmp.eq.s32.totalorder %s17, 0
      %p71 = por %p69, %p70
      %p72 = scmp.ne.s32.totalorder %s60, %s61
      %p73 = scmp.eq.s32.totalorder %s18, 1
      %p74 = por %p72, %p73
      %p76 = scmp.ne.s32.totalorder %s61, %s75
      %p77 = scmp.eq.s32.totalorder %s18, 0
      %p78 = por %p76, %p77
      %s80 = sadd.s32 %s79, 1
      %p83 = scmp.eq.s32.totalorder %s12, 1
      %p84 = scmp.ne.s32.totalorder %s79, %s81
      %p85 = scmp.eq.s32.totalorder %s12, 0
      %p86 = por %p84, %p85
      %p87 = scmp.ne.s32.totalorder %s79, %s81
      %p88 = scmp.eq.s32.totalorder %s17, 1
      %p89 = por %p87, %p88
      %p90 = scmp.ne.s32.totalorder %s81, %s82
      %p91 = scmp.eq.s32.totalorder %s17, 0
      %p92 = por %p90, %p91
      %p93 = scmp.ne.s32.totalorder %s81, %s82
      %p94 = scmp.eq.s32.totalorder %s18, 1
      %p95 = por %p93, %p94
      %p97 = scmp.ne.s32.totalorder %s82, %s96
      %p98 = scmp.eq.s32.totalorder %s18, 0
      %p99 = por %p97, %p98
      %s100 = ssub.s32 %s19, %s31
      %s101 = ssub.s32 %s20, %s27
      %s102 = sor.u32 %s100, %s101
      %p103 = scmp.eq.s32.totalorder %s102, 0
      %s105 = sadd.s32 %s104, 1
      %s106 = scalar_select %p103, %s104, %s105
      %p109 = pneg %p103
      %p110 = scmp.eq.s32.totalorder %s12, 1
      %p111 = por %p109, %p110
      %p112 = scmp.ne.s32.totalorder %s104, %s107
      %p113 = scmp.eq.s32.totalorder %s12, 0
      %p114 = por %p112, %p113
      %p115 = scmp.ne.s32.totalorder %s104, %s107
      %p116 = scmp.eq.s32.totalorder %s17, 1
      %p117 = por %p115, %p116
      %p118 = scmp.ne.s32.totalorder %s107, %s108
      %p119 = scmp.eq.s32.totalorder %s17, 0
      %p120 = por %p118, %p119
      %p121 = scmp.ne.s32.totalorder %s107, %s108
      %p122 = scmp.eq.s32.totalorder %s18, 1
      %p123 = por %p121, %p122
      %p125 = scmp.ne.s32.totalorder %s108, %s124
      %p126 = scmp.eq.s32.totalorder %s18, 0
      %p127 = por %p125, %p126
      %p128 = scmp.le.s32.totalorder 1, %s12
      %p129 = scmp.lt.s32.totalorder %s12, 3
      %p130 = pnand %p128, %p129
      %p131 = pneg %p130
      // Predicated region
      $region9: #{conv_forward.1} parent=5 // pred_check
        _
      $region10: #{conv_forward.1} parent=5 // pred_check_branch
        %133 = sbr.rel (%p130) target = $region12
      $region11: #{conv_forward.1} parent=5 // pred_region
        %s134 = ssub.s32 %s12, 1
        // Predicated region
        $region13: #{conv_forward.1} parent=11 // pred_check
          %p135 = pneg %p71
        $region14: #{conv_forward.1} parent=11 // pred_check_branch
          %137 = sbr.rel (%p135) target = $region16
        $region15: #{conv_forward.1} parent=11 // pred_region
          _
        $region16: #{conv_forward.1} parent=11 // pred_fallthru
          _
        // Predicated region
        $region17: #{conv_forward.1} parent=11 // pred_check
          %p138 = pneg %p92
        $region18: #{conv_forward.1} parent=11 // pred_check_branch
          %140 = sbr.rel (%p138) target = $region20
        $region19: #{conv_forward.1} parent=11 // pred_region
          _
        $region20: #{conv_forward.1} parent=11 // pred_fallthru
          _
      $region12: #{conv_forward.1} parent=5 // pred_fallthru
        _
      %p141 = scmp.lt.s32.totalorder %s12, 2
      // Predicated region
      $region21: #{conv_forward.1} parent=5 // pred_check
        %p142 = pneg %p141
      $region22: #{conv_forward.1} parent=5 // pred_check_branch
        %144 = sbr.rel (%p142) target = $region24
      $region23: #{conv_forward.1} parent=5 // pred_region
        // Predicated region
        $region25: #{conv_forward.1} parent=23 // pred_check
          %p145 = pneg %p44
        $region26: #{conv_forward.1} parent=23 // pred_check_branch
          %147 = sbr.rel (%p145) target = $region28
        $region27: #{conv_forward.1} parent=23 // pred_region
          %p148 = scmp.lt.s32.totalorder %s19, 1
          %s149 = scalar_select %p148, %s19, 1
          %s150 = smul.addr %s149, 3
          %s151 = smul.addr %s150, 8
          %s152 = scalar_lea.vmem %s0, %s151
        $region28: #{conv_forward.1} parent=23 // pred_fallthru
          _
      $region24: #{conv_forward.1} parent=5 // pred_fallthru
        _
      %p153 = scmp.le.s32.totalorder 1, %s12
      %p154 = scmp.lt.s32.totalorder %s12, 3
      %p155 = pnand %p153, %p154
      %p156 = pneg %p155
      // Predicated region
      $region29: #{conv_forward.1} parent=5 // pred_check
        _
      $region30: #{conv_forward.1} parent=5 // pred_check_branch
        %158 = sbr.rel (%p155) target = $region32
      $region31: #{conv_forward.1} parent=5 // pred_region
        %s159 = ssub.s32 %s12, 1
        %p160 = scmp.lt.s32.totalorder %s21, 1
        %s161 = scalar_select %p160, %s21, 1
        %s162 = smul.addr %s161, 3
        %s163 = smul.addr %s162, 8
        %s164 = scalar_lea.vmem %s0, %s163
        %p165 = pneg %p50
        %p166 = pneg %p47
        %p167 = pneg %p71
        %p168 = pneg %p68
        %p169 = pneg %p92
        %p170 = pneg %p89
        %p171 = pneg %p120
        %p172 = pneg %p117
        %s173 = sand.u32 %s107, 1
        %s174 = scalar_lea.sflag [#allocation3], %s173
        %s175 = sand.u32 %s107, 1
        %s176 = smul.addr %s175, 16
        %s177 = scalar_lea.vmem [#allocation2], %s176
        %p178 = scmp.lt.s32.totalorder %s21, 1
        %s179 = scalar_select %p178, %s21, 1
        %s180 = smul.addr %s179, 3
        %s181 = smul.addr %s180, 8
        %s182 = scalar_lea.vmem %s0, %s181
        %s183 = smul.u32 2, %s22
        %s184 = smul.u32 %s22, 16
        %s185 = scalar_lea.vmem %s182, %s184
        %v186 = vld [vmem:[%s185] sm:$0xff]
        %v187 = vld [vmem:[%s185 + $0x8] sm:$0xff]
        %v188 = vld [vmem:[%s185 + $0x10] sm:$0xff]
        %v189 = vld [vmem:[%s2] sm:$0x1]
        %v190 = vld [vmem:[%s1] sm:$0xff]
        %v191 = vld [vmem:[%s1 + $0x8] sm:$0xff]
        %v192 = vld [vmem:[%s1 + $0x10] sm:$0xff]
        %v193 = vld [vmem:[%s1 + $0x18] sm:$0xff]
        %v194 = vld [vmem:[%s1 + $0x20] sm:$0xff]
        %v195 = vld [vmem:[%s1 + $0x28] sm:$0xff]
        %v196 = vld [vmem:[%s1 + $0x30] sm:$0xff]
        %v197 = vld [vmem:[%s1 + $0x38] sm:$0xff]
        %v198 = vld [vmem:[%s1 + $0x40] sm:$0xff]
        %v199 = vld [vmem:[%s1 + $0x48] sm:$0xff]
        %v200 = vld [vmem:[%s1 + $0x50] sm:$0xff]
        %v201 = vld [vmem:[%s1 + $0x58] sm:$0xff]
        %v202 = vld [vmem:[%s1 + $0x60] sm:$0xff]
        %v203 = vld [vmem:[%s1 + $0x68] sm:$0xff]
        %v204 = vld [vmem:[%s1 + $0x70] sm:$0xff]
        %v205 = vld [vmem:[%s1 + $0x78] sm:$0xff]
        %206 = vmatprep.subr.mxu0 0.0
        %207 = vmatpush1.msra.mxu0 %v205
        %208 = vmatprep.subr.mxu0 0.0
        %209 = vmatpush1.msra.mxu0 %v204
        %210 = vmatprep.subr.mxu0 0.0
        %211 = vmatpush1.msra.mxu0 %v203
        %212 = vmatprep.subr.mxu0 0.0
        %213 = vmatpush1.msra.mxu0 %v202
        %214 = vmatprep.subr.mxu0 0.0
        %215 = vmatpush1.msra.mxu0 %v201
        %216 = vmatprep.subr.mxu0 0.0
        %217 = vmatpush1.msra.mxu0 %v200
        %218 = vmatprep.subr.mxu0 0.0
        %219 = vmatpush1.msra.mxu0 %v199
        %220 = vmatprep.subr.mxu0 0.0
        %221 = vmatpush1.msra.mxu0 %v198
        %222 = vmatprep.subr.mxu0 0.0
        %223 = vmatpush1.msra.mxu0 %v197
        %224 = vmatprep.subr.mxu0 0.0
        %225 = vmatpush1.msra.mxu0 %v196
        %226 = vmatprep.subr.mxu0 0.0
        %227 = vmatpush1.msra.mxu0 %v195
        %228 = vmatprep.subr.mxu0 0.0
        %229 = vmatpush1.msra.mxu0 %v194
        %230 = vmatprep.subr.mxu0 0.0
        %231 = vmatpush1.msra.mxu0 %v193
        %232 = vmatprep.subr.mxu0 0.0
        %233 = vmatpush1.msra.mxu0 %v192
        %234 = vmatprep.subr.mxu0 0.0
        %235 = vmatpush1.msra.mxu0 %v191
        %236 = vmatprep.subr.mxu0 0.0
        %237 = vmatpush1.msra.mxu0 %v190
        %238 = vmatprep.subr.mxu0 0.0
        %239 = vmatpush2.msra.mxu0 0.0
        %240 = vmatprep.subr.mxu0 0.0
        %241 = vmatpush2.msra.mxu0 0.0
        %242 = vmatprep.subr.mxu0 0.0
        %243 = vmatpush2.msra.mxu0 0.0
        %244 = vmatprep.subr.mxu0 0.0
        %245 = vmatpush2.msra.mxu0 0.0
        %246 = vmatprep.subr.mxu0 0.0
        %247 = vmatpush2.msra.mxu0 0.0
        %248 = vmatprep.subr.mxu0 0.0
        %249 = vmatpush2.msra.mxu0 0.0
        %250 = vmatprep.subr.mxu0 0.0
        %251 = vmatpush2.msra.mxu0 0.0
        %252 = vmatprep.subr.mxu0 0.0
        %253 = vmatpush2.msra.mxu0 0.0
        %254 = vmatprep.subr.mxu0 0.0
        %255 = vmatpush2.msra.mxu0 0.0
        %256 = vmatprep.subr.mxu0 0.0
        %257 = vmatpush2.msra.mxu0 0.0
        %258 = vmatprep.subr.mxu0 0.0
        %259 = vmatpush2.msra.mxu0 0.0
        %260 = vmatprep.subr.mxu0 0.0
        %261 = vmatpush2.msra.mxu0 0.0
        %262 = vmatprep.subr.mxu0 0.0
        %263 = vmatpush2.msra.mxu0 0.0
        %264 = vmatprep.subr.mxu0 0.0
        %265 = vmatpush2.msra.mxu0 0.0
        %266 = vmatprep.subr.mxu0 0.0
        %267 = vmatpush2.msra.mxu0 0.0
        %268 = vmatprep.subr.mxu0 0.0
        %269 = vmatpush2.msra.mxu0 0.0
        %270 = vmatprep.mubr.f32.mxu0 0.0
        %271 = vmatmul.mubr.f32.gmra.mxu0 %v186
        %v272 = vpop.f32.mrf.mxu0
        %v273 = vadd.f32 0.0, %v272
        %v274 = vpop.f32.mrf.mxu0
        %275 = vmatprep.mubr.f32.mxu0 0.0
        %276 = vmatmul.mubr.f32.gmra.mxu0 %v187
        %v277 = vpop.f32.mrf.mxu0
        %v278 = vadd.f32 0.0, %v277
        %v279 = vpop.f32.mrf.mxu0
        %280 = vdwg.mxu0
        %v282 = vlaneseq
        %v283 = vshrl.u32 %v282, 7
        %v284 = vsub.s32 0, %v283
        %v285 = vrot.slane %v189, %v284
        %v287 = vadd.f32 %v285, %v273
        %v288 = vadd.f32 %v285, %v278
        %s289 = scalar_lea.vmem %s1, 128
        %v290 = vld [vmem:[%s289] sm:$0xff]
        %v291 = vld [vmem:[%s289 + $0x8] sm:$0xff]
        %v292 = vld [vmem:[%s289 + $0x10] sm:$0xff]
        %v293 = vld [vmem:[%s289 + $0x18] sm:$0xff]
        %v294 = vld [vmem:[%s289 + $0x20] sm:$0xff]
        %v295 = vld [vmem:[%s289 + $0x28] sm:$0xff]
        %v296 = vld [vmem:[%s289 + $0x30] sm:$0xff]
        %v297 = vld [vmem:[%s289 + $0x38] sm:$0xff]
        %v298 = vld [vmem:[%s289 + $0x40] sm:$0xff]
        %v299 = vld [vmem:[%s289 + $0x48] sm:$0xff]
        %v300 = vld [vmem:[%s289 + $0x50] sm:$0xff]
        %v301 = vld [vmem:[%s289 + $0x58] sm:$0xff]
        %v302 = vld [vmem:[%s289 + $0x60] sm:$0xff]
        %v303 = vld [vmem:[%s289 + $0x68] sm:$0xff]
        %v304 = vld [vmem:[%s289 + $0x70] sm:$0xff]
        %v305 = vld [vmem:[%s289 + $0x78] sm:$0xff]
        %vm309 = vcmask 1046528
        %v310 = vrot.slane %v186, 1
        %v311 = vrot.slane %v187, 1
        %v312 = vsel %vm309, %v310, %v311
        %v313 = vrot.slane %v188, 1
        %v314 = vsel %vm309, %v311, %v313
        %317 = vmatprep.subr.mxu0 0.0
        %318 = vmatpush1.msra.mxu0 %v305
        %319 = vmatprep.subr.mxu0 0.0
        %320 = vmatpush1.msra.mxu0 %v304
        %321 = vmatprep.subr.mxu0 0.0
        %322 = vmatpush1.msra.mxu0 %v303
        %323 = vmatprep.subr.mxu0 0.0
        %324 = vmatpush1.msra.mxu0 %v302
        %325 = vmatprep.subr.mxu0 0.0
        %326 = vmatpush1.msra.mxu0 %v301
        %327 = vmatprep.subr.mxu0 0.0
        %328 = vmatpush1.msra.mxu0 %v300
        %329 = vmatprep.subr.mxu0 0.0
        %330 = vmatpush1.msra.mxu0 %v299
        %331 = vmatprep.subr.mxu0 0.0
        %332 = vmatpush1.msra.mxu0 %v298
        %333 = vmatprep.subr.mxu0 0.0
        %334 = vmatpush1.msra.mxu0 %v297
        %335 = vmatprep.subr.mxu0 0.0
        %336 = vmatpush1.msra.mxu0 %v296
        %337 = vmatprep.subr.mxu0 0.0
        %338 = vmatpush1.msra.mxu0 %v295
        %339 = vmatprep.subr.mxu0 0.0
        %340 = vmatpush1.msra.mxu0 %v294
        %341 = vmatprep.subr.mxu0 0.0
        %342 = vmatpush1.msra.mxu0 %v293
        %343 = vmatprep.subr.mxu0 0.0
        %344 = vmatpush1.msra.mxu0 %v292
        %345 = vmatprep.subr.mxu0 0.0
        %346 = vmatpush1.msra.mxu0 %v291
        %347 = vmatprep.subr.mxu0 0.0
        %348 = vmatpush1.msra.mxu0 %v290
        %349 = vmatprep.subr.mxu0 0.0
        %350 = vmatpush2.msra.mxu0 0.0
        %351 = vmatprep.subr.mxu0 0.0
        %352 = vmatpush2.msra.mxu0 0.0
        %353 = vmatprep.subr.mxu0 0.0
        %354 = vmatpush2.msra.mxu0 0.0
        %355 = vmatprep.subr.mxu0 0.0
        %356 = vmatpush2.msra.mxu0 0.0
        %357 = vmatprep.subr.mxu0 0.0
        %358 = vmatpush2.msra.mxu0 0.0
        %359 = vmatprep.subr.mxu0 0.0
        %360 = vmatpush2.msra.mxu0 0.0
        %361 = vmatprep.subr.mxu0 0.0
        %362 = vmatpush2.msra.mxu0 0.0
        %363 = vmatprep.subr.mxu0 0.0
        %364 = vmatpush2.msra.mxu0 0.0
        %365 = vmatprep.subr.mxu0 0.0
        %366 = vmatpush2.msra.mxu0 0.0
        %367 = vmatprep.subr.mxu0 0.0
        %368 = vmatpush2.msra.mxu0 0.0
        %369 = vmatprep.subr.mxu0 0.0
        %370 = vmatpush2.msra.mxu0 0.0
        %371 = vmatprep.subr.mxu0 0.0
        %372 = vmatpush2.msra.mxu0 0.0
        %373 = vmatprep.subr.mxu0 0.0
        %374 = vmatpush2.msra.mxu0 0.0
        %375 = vmatprep.subr.mxu0 0.0
        %376 = vmatpush2.msra.mxu0 0.0
        %377 = vmatprep.subr.mxu0 0.0
        %378 = vmatpush2.msra.mxu0 0.0
        %379 = vmatprep.subr.mxu0 0.0
        %380 = vmatpush2.msra.mxu0 0.0
        %381 = vmatprep.mubr.f32.mxu0 0.0
        %382 = vmatmul.mubr.f32.gmra.mxu0 %v312
        %v383 = vpop.f32.mrf.mxu0
        %v384 = vadd.f32 0.0, %v383
        %v385 = vpop.f32.mrf.mxu0
        %386 = vmatprep.mubr.f32.mxu0 0.0
        %387 = vmatmul.mubr.f32.gmra.mxu0 %v314
        %v388 = vpop.f32.mrf.mxu0
        %v389 = vadd.f32 0.0, %v388
        %v390 = vpop.f32.mrf.mxu0
        %391 = vdwg.mxu0
        %v392 = vadd.f32 %v287, %v384
        %v393 = vadd.f32 %v288, %v389
        %s394 = scalar_lea.vmem %s1, 256
        %v395 = vld [vmem:[%s394] sm:$0xff]
        %v396 = vld [vmem:[%s394 + $0x8] sm:$0xff]
        %v397 = vld [vmem:[%s394 + $0x10] sm:$0xff]
        %v398 = vld [vmem:[%s394 + $0x18] sm:$0xff]
        %v399 = vld [vmem:[%s394 + $0x20] sm:$0xff]
        %v400 = vld [vmem:[%s394 + $0x28] sm:$0xff]
        %v401 = vld [vmem:[%s394 + $0x30] sm:$0xff]
        %v402 = vld [vmem:[%s394 + $0x38] sm:$0xff]
        %v403 = vld [vmem:[%s394 + $0x40] sm:$0xff]
        %v404 = vld [vmem:[%s394 + $0x48] sm:$0xff]
        %v405 = vld [vmem:[%s394 + $0x50] sm:$0xff]
        %v406 = vld [vmem:[%s394 + $0x58] sm:$0xff]
        %v407 = vld [vmem:[%s394 + $0x60] sm:$0xff]
        %v408 = vld [vmem:[%s394 + $0x68] sm:$0xff]
        %v409 = vld [vmem:[%s394 + $0x70] sm:$0xff]
        %v410 = vld [vmem:[%s394 + $0x78] sm:$0xff]
        %vm411 = vcmask 1045504
        %v412 = vrot.slane %v186, 2
        %v413 = vrot.slane %v187, 2
        %v414 = vsel %vm411, %v412, %v413
        %v415 = vrot.slane %v188, 2
        %v416 = vsel %vm411, %v413, %v415
        %419 = vmatprep.subr.mxu0 0.0
        %420 = vmatpush1.msra.mxu0 %v410
        %421 = vmatprep.subr.mxu0 0.0
        %422 = vmatpush1.msra.mxu0 %v409
        %423 = vmatprep.subr.mxu0 0.0
        %424 = vmatpush1.msra.mxu0 %v408
        %425 = vmatprep.subr.mxu0 0.0
        %426 = vmatpush1.msra.mxu0 %v407
        %427 = vmatprep.subr.mxu0 0.0
        %428 = vmatpush1.msra.mxu0 %v406
        %429 = vmatprep.subr.mxu0 0.0
        %430 = vmatpush1.msra.mxu0 %v405
        %431 = vmatprep.subr.mxu0 0.0
        %432 = vmatpush1.msra.mxu0 %v404
        %433 = vmatprep.subr.mxu0 0.0
        %434 = vmatpush1.msra.mxu0 %v403
        %435 = vmatprep.subr.mxu0 0.0
        %436 = vmatpush1.msra.mxu0 %v402
        %437 = vmatprep.subr.mxu0 0.0
        %438 = vmatpush1.msra.mxu0 %v401
        %439 = vmatprep.subr.mxu0 0.0
        %440 = vmatpush1.msra.mxu0 %v400
        %441 = vmatprep.subr.mxu0 0.0
        %442 = vmatpush1.msra.mxu0 %v399
        %443 = vmatprep.subr.mxu0 0.0
        %444 = vmatpush1.msra.mxu0 %v398
        %445 = vmatprep.subr.mxu0 0.0
        %446 = vmatpush1.msra.mxu0 %v397
        %447 = vmatprep.subr.mxu0 0.0
        %448 = vmatpush1.msra.mxu0 %v396
        %449 = vmatprep.subr.mxu0 0.0
        %450 = vmatpush1.msra.mxu0 %v395
        %451 = vmatprep.subr.mxu0 0.0
        %452 = vmatpush2.msra.mxu0 0.0
        %453 = vmatprep.subr.mxu0 0.0
        %454 = vmatpush2.msra.mxu0 0.0
        %455 = vmatprep.subr.mxu0 0.0
        %456 = vmatpush2.msra.mxu0 0.0
        %457 = vmatprep.subr.mxu0 0.0
        %458 = vmatpush2.msra.mxu0 0.0
        %459 = vmatprep.subr.mxu0 0.0
        %460 = vmatpush2.msra.mxu0 0.0
        %461 = vmatprep.subr.mxu0 0.0
        %462 = vmatpush2.msra.mxu0 0.0
        %463 = vmatprep.subr.mxu0 0.0
        %464 = vmatpush2.msra.mxu0 0.0
        %465 = vmatprep.subr.mxu0 0.0
        %466 = vmatpush2.msra.mxu0 0.0
        %467 = vmatprep.subr.mxu0 0.0
        %468 = vmatpush2.msra.mxu0 0.0
        %469 = vmatprep.subr.mxu0 0.0
        %470 = vmatpush2.msra.mxu0 0.0
        %471 = vmatprep.subr.mxu0 0.0
        %472 = vmatpush2.msra.mxu0 0.0
        %473 = vmatprep.subr.mxu0 0.0
        %474 = vmatpush2.msra.mxu0 0.0
        %475 = vmatprep.subr.mxu0 0.0
        %476 = vmatpush2.msra.mxu0 0.0
        %477 = vmatprep.subr.mxu0 0.0
        %478 = vmatpush2.msra.mxu0 0.0
        %479 = vmatprep.subr.mxu0 0.0
        %480 = vmatpush2.msra.mxu0 0.0
        %481 = vmatprep.subr.mxu0 0.0
        %482 = vmatpush2.msra.mxu0 0.0
        %483 = vmatprep.mubr.f32.mxu0 0.0
        %484 = vmatmul.mubr.f32.gmra.mxu0 %v414
        %v485 = vpop.f32.mrf.mxu0
        %v486 = vadd.f32 0.0, %v485
        %v487 = vpop.f32.mrf.mxu0
        %488 = vmatprep.mubr.f32.mxu0 0.0
        %489 = vmatmul.mubr.f32.gmra.mxu0 %v416
        %v490 = vpop.f32.mrf.mxu0
        %v491 = vadd.f32 0.0, %v490
        %v492 = vpop.f32.mrf.mxu0
        %493 = vdwg.mxu0
        %v494 = vadd.f32 %v392, %v486
        %v495 = vadd.f32 %v393, %v491
        %496 = vst [vmem:[%s177] sm:$0xff] %v494
        %497 = vst [vmem:[%s177 + $0x8] sm:$0xff] %v495
        %s498 = sand.u32 %s107, 1
        %s499 = scalar_lea.sflag [#allocation3], %s498
        %s500 = sand.u32 %s107, 1
        %s501 = smul.addr %s500, 16
        %s502 = scalar_lea.vmem [#allocation2], %s501
        // Predicated region
        $region33: #{conv_forward.1} parent=31 // pred_check
          %p503 = pneg %p117
        $region34: #{conv_forward.1} parent=31 // pred_check_branch
          %505 = sbr.rel (%p503) target = $region36
        $region35: #{conv_forward.1} parent=31 // pred_region
          %s506 = smul.u32 2, %s22
          %s508 = ssub.s32 256, 256
          %509 = vsyncadd %s499, %s508
          %s510 = smul.addr %s21, 2
          %s511 = sadd.s32 %s506, %s510
          %s512 = smul.addr %s511, 128
          %s513 = scalar_lea.hbm %s3, %s512
          %s514 = sshll.u32 %s502, 4
          %s515 = int_to_ptr.vmem [resolvable:$true] %s514
          %520 = dma.vmem_to_hbm [thread:$0]  %s515, 256, %s513, %s499, 128, 128, 8
        $region36: #{conv_forward.1} parent=31 // pred_fallthru
          _
      $region32: #{conv_forward.1} parent=5 // pred_fallthru
        _
      %p521 = scmp.le.s32.totalorder 2, %s12
      // Predicated region
      $region37: #{conv_forward.1} parent=5 // pred_check
        %p522 = pneg %p521
      $region38: #{conv_forward.1} parent=5 // pred_check_branch
        %524 = sbr.rel (%p522) target = $region40
      $region39: #{conv_forward.1} parent=5 // pred_region
        %s525 = ssub.s32 %s12, 2
        // Predicated region
        $region41: #{conv_forward.1} parent=39 // pred_check
          %p526 = pneg %p123
        $region42: #{conv_forward.1} parent=39 // pred_check_branch
          %528 = sbr.rel (%p526) target = $region44
        $region43: #{conv_forward.1} parent=39 // pred_region
          %s529 = sand.u32 %s108, 1
          %s530 = scalar_lea.sflag [#allocation3], %s529
          %s531 = sand.u32 %s108, 1
          %s532 = smul.addr %s531, 16
          %s533 = scalar_lea.vmem [#allocation2], %s532
          %534 = dma.done %s530, 256
        $region44: #{conv_forward.1} parent=39 // pred_fallthru
          _
      $region40: #{conv_forward.1} parent=5 // pred_fallthru
        _
    $region6: #{conv_forward.1} parent=1 // loop_footer
      %s16 = sadd.s32 1, %s12
    $region7: #{conv_forward.1} parent=1 // loop_footer_branch
      %11 = sbr.rel target = $region3
    $region8: #{conv_forward.1} parent=1 // loop_exit
      _
    %535 = vsyncpa [#allocation3], 1
    %s536 = scalar_lea.sflag [#allocation3], 1
    %537 = vsyncpa %s536, 1

</llo_original>
